<compile_context>
chip_gen: v7x
topology: tpu7x:2x2x1
jax: 0.10.0
libtpu: 0.0.40
codegen_flags: <defaults>
</compile_context>

<pallas_src>
import functools

import jax
import jax.numpy as jnp
from jax.experimental import pallas as pl
from jax.experimental.pallas import tpu as pltpu

LANE = 128
VMEM_LIMIT = 64 * 1024 * 1024


def _round_up(x, m):
    return (x + m - 1) // m * m


def _pad_gate_lanes(w, h, hp):
    """Pad packed-gate last dim [..., 4*h] -> [..., 4*hp]; each gate slab zero-padded."""
    if h == hp:
        return w
    pad = [(0, 0)] * (w.ndim - 1) + [(0, hp - h)]
    parts = [jnp.pad(w[..., k * h:(k + 1) * h], pad) for k in range(4)]
    return jnp.concatenate(parts, axis=-1)


def _pad_lanes(a, h, hp):
    # NOTE: padded gate lanes see logits of 0 -> sigmoid 0.5 / tanh 0.  This is
    # only inert because h0/c0 padding is ZERO here (0.5*0 + 0.5*0 = 0), so the
    # padded state stays 0 forever.  Do not bypass this zero-fill.
    if h == hp:
        return a
    return jnp.pad(a, [(0, 0)] * (a.ndim - 1) + [(0, hp - h)])


# --------------------------------------------------------------------------
# Kernel 1: batched input projection for all timesteps (no recurrence):
#   row-tiled [rows, In] @ [In, 4*Hp] + b.  Grid over row tiles ("parallel").
# --------------------------------------------------------------------------
def _input_proj_kernel(x_ref, wx_ref, b_ref, xg_ref):
    xg_ref[...] = (
        jnp.dot(x_ref[...], wx_ref[...], preferred_element_type=jnp.float32)
        + b_ref[...]
    ).astype(xg_ref.dtype)


# --------------------------------------------------------------------------
# Kernel 2: the sequential recurrence.  grid=(Tp // U,), U timesteps per grid
# step, state carried in VMEM scratch.  Wh (bf16) is a constant-index input;
# h0/c0 live in HBM (pl.ANY) and are DMA'd once into scratch at t == 0.
# --------------------------------------------------------------------------
def _lstm_recurrence_kernel(xg_ref, wh_ref, h0_hbm, c0_hbm,
                            ht_ref, ct_ref,
                            h_scr, c_scr, init_sem, *, hp, unroll):
    t = pl.program_id(0)

    @pl.when(t == 0)
    def _():
        # One-time DMA of the initial state HBM -> VMEM scratch.
        h_cp = pltpu.make_async_copy(h0_hbm, h_scr, init_sem.at[0])
        c_cp = pltpu.make_async_copy(c0_hbm, c_scr, init_sem.at[1])
        h_cp.start()
        c_cp.start()
        h_cp.wait()
        c_cp.wait()

    h = h_scr[...]
    c = c_scr[...]

    # Static inner loop over U timesteps (== lax.fori_loop(..., unroll=True)
    # fully unrolled): amortizes per-grid-step overhead, h/c carried in vregs.
    for u in range(unroll):
        # Recurrent gate projection on the MXU: bf16 operands, f32 accumulate.
        rec = jnp.dot(h.astype(jnp.bfloat16), wh_ref[...],
                      preferred_element_type=jnp.float32)
        gates = xg_ref[u].astype(jnp.float32) + rec

        # Gate slabs are 128-lane aligned (Hp multiple of 128) -> free views.
        i_t = jax.nn.sigmoid(gates[:, 0 * hp:1 * hp])
        f_t = jax.nn.sigmoid(gates[:, 1 * hp:2 * hp])
        c_bar = jnp.tanh(gates[:, 2 * hp:3 * hp])
        o_t = jax.nn.sigmoid(gates[:, 3 * hp:4 * hp])

        c = f_t * c + i_t * c_bar
        h = o_t * jnp.tanh(c)

        # Two direct lane-dense stores per step (no concat copy).
        ht_ref[u] = h.astype(ht_ref.dtype)
        ct_ref[u] = c.astype(ct_ref.dtype)

    h_scr[...] = h
    c_scr[...] = c


# --------------------------------------------------------------------------
# Wrappers
# --------------------------------------------------------------------------
def lstm_sequence_pallas(x_seq, h0, c0, wx, wh, b, *, unroll=4,
                         xg_dtype=jnp.float32):
    """Run the LSTM cell over a whole sequence with the recurrence fused in-kernel."""
    T, B, in_num = x_seq.shape
    H = h0.shape[1]
    Hp = _round_up(H, LANE)

    # U timesteps per grid step (pad T up to a multiple of U; extra trailing
    # steps compute throwaway values that are sliced off).
    u_eff = max(1, min(unroll, T))
    Tp = _round_up(T, u_eff)

    # Lane-pad every per-gate slab to a 128-multiple.  Zero rows/cols keep the
    # padding inert (padded gate logits are 0 and padded h0/c0 are 0).
    wx_p = _pad_gate_lanes(wx, H, Hp).astype(jnp.float32)           # [In, 4*Hp]
    wh_rows = jnp.pad(wh, [(0, Hp - H), (0, 0)]) if Hp != H else wh
    wh_p = _pad_gate_lanes(wh_rows, H, Hp).astype(jnp.bfloat16)     # [Hp, 4*Hp] bf16
    b_p = _pad_gate_lanes(b, H, Hp).astype(jnp.float32)             # [1, 4*Hp]
    h0_p = _pad_lanes(h0, H, Hp).astype(jnp.float32)                # [B, Hp]
    c0_p = _pad_lanes(c0, H, Hp).astype(jnp.float32)                # [B, Hp]

    # ---------------- Phase 1: batched input projection (row-tiled) ----------
    x_pad = jnp.pad(x_seq.astype(jnp.float32), ((0, Tp - T), (0, 0), (0, 0)))
    R = Tp * B
    x2d = x_pad.reshape(R, in_num)

    row_tile = 256
    if R < row_tile:
        row_tile = _round_up(R, 8)
    Rp = _round_up(R, row_tile)
    if Rp != R:
        x2d = jnp.pad(x2d, ((0, Rp - R), (0, 0)))

    xg2d = pl.pallas_call(
        _input_proj_kernel,
        out_shape=jax.ShapeDtypeStruct((Rp, 4 * Hp), xg_dtype),
        grid=(Rp // row_tile,),
        in_specs=[
            pl.BlockSpec((row_tile, in_num), lambda r: (r, 0)),   # x rows
            pl.BlockSpec((in_num, 4 * Hp), lambda r: (0, 0)),     # Wx (constant)
            pl.BlockSpec((1, 4 * Hp), lambda r: (0, 0)),          # bias (constant)
        ],
        out_specs=pl.BlockSpec((row_tile, 4 * Hp), lambda r: (r, 0)),
        compiler_params=pltpu.CompilerParams(
            dimension_semantics=("parallel",),
            vmem_limit_bytes=VMEM_LIMIT,
        ),
    )(x2d, wx_p, b_p)
    xg = xg2d[:R].reshape(Tp, B, 4 * Hp)

    # ---------------- Phase 2: sequential recurrence -------------------------
    ht_seq, ct_seq = pl.pallas_call(
        functools.partial(_lstm_recurrence_kernel, hp=Hp, unroll=u_eff),
        out_shape=(
            jax.ShapeDtypeStruct((Tp, B, Hp), jnp.float32),
            jax.ShapeDtypeStruct((Tp, B, Hp), jnp.float32),
        ),
        grid=(Tp // u_eff,),
        in_specs=[
            pl.BlockSpec((u_eff, B, 4 * Hp), lambda t: (t, 0, 0)),  # xg[t*U:(t+1)*U]
            pl.BlockSpec((Hp, 4 * Hp), lambda t: (0, 0)),           # Wh bf16 (constant)
            pl.BlockSpec(memory_space=pl.ANY),                      # h0 (HBM, DMA'd once)
            pl.BlockSpec(memory_space=pl.ANY),                      # c0 (HBM, DMA'd once)
        ],
        out_specs=(
            pl.BlockSpec((u_eff, B, Hp), lambda t: (t, 0, 0)),      # ht
            pl.BlockSpec((u_eff, B, Hp), lambda t: (t, 0, 0)),      # ct
        ),
        scratch_shapes=[
            pltpu.VMEM((B, Hp), jnp.float32),   # h carry (resident across steps)
            pltpu.VMEM((B, Hp), jnp.float32),   # c carry (resident across steps)
            pltpu.SemaphoreType.DMA((2,)),      # one-time h0/c0 fetch
        ],
        compiler_params=pltpu.CompilerParams(
            dimension_semantics=("arbitrary",),  # strictly sequential recurrence
            vmem_limit_bytes=VMEM_LIMIT,
        ),
    )(xg, wh_p, h0_p, c0_p)

    return ht_seq[:T, :, :H], ct_seq[:T, :, :H]


def lstm_cell_pallas(xt, ht_1, ct_1, wx, wh, b):
    """Exactly the original module's single-step forward (T == 1)."""
    ht_seq, ct_seq = lstm_sequence_pallas(xt[None], ht_1, ct_1, wx, wh, b)
    return ht_seq[0], ct_seq[0]


def lstm_cell_ref(xt, ht_1, ct_1, wx, wh, b):
    H = ht_1.shape[1]
    gates = xt @ wx + ht_1 @ wh + b
    i_t = jax.nn.sigmoid(gates[:, 0 * H:1 * H])
    f_t = jax.nn.sigmoid(gates[:, 1 * H:2 * H])
    c_bar = jnp.tanh(gates[:, 2 * H:3 * H])
    o_t = jax.nn.sigmoid(gates[:, 3 * H:4 * H])
    ct = f_t * ct_1 + i_t * c_bar
    ht = o_t * jnp.tanh(ct)
    return ht, ct


if __name__ == "__main__":
    T = 8            # sequence length (LRCN time steps)
    B = 8            # batch
    INPUT_NUM = 32   # input_num
    HIDDEN = 32      # hidden_num

    key = jax.random.PRNGKey(0)
    keys = jax.random.split(key, 16)

    def uniform(k, shape, fan_in):
        bound = 1.0 / jnp.sqrt(fan_in)
        return jax.random.uniform(k, shape, jnp.float32, -bound, bound)

    # Per-gate weights in PyTorch nn.Linear layout [out, in]; pack transposed.
    Wxi = uniform(keys[0], (HIDDEN, INPUT_NUM), INPUT_NUM)
    Wxf = uniform(keys[1], (HIDDEN, INPUT_NUM), INPUT_NUM)
    Wxc = uniform(keys[2], (HIDDEN, INPUT_NUM), INPUT_NUM)
    Wxo = uniform(keys[3], (HIDDEN, INPUT_NUM), INPUT_NUM)
    Whi = uniform(keys[4], (HIDDEN, HIDDEN), HIDDEN)
    Whf = uniform(keys[5], (HIDDEN, HIDDEN), HIDDEN)
    Whc = uniform(keys[6], (HIDDEN, HIDDEN), HIDDEN)
    Who = uniform(keys[7], (HIDDEN, HIDDEN), HIDDEN)
    bxi = uniform(keys[8], (HIDDEN,), INPUT_NUM)
    bxf = uniform(keys[9], (HIDDEN,), INPUT_NUM)
    bxc = uniform(keys[10], (HIDDEN,), INPUT_NUM)
    bxo = uniform(keys[11], (HIDDEN,), INPUT_NUM)

    Wx = jnp.concatenate([Wxi, Wxf, Wxc, Wxo], axis=0).T          # [INPUT_NUM, 4H]
    Wh = jnp.concatenate([Whi, Whf, Whc, Who], axis=0).T          # [HIDDEN, 4H]
    b = jnp.concatenate([bxi, bxf, bxc, bxo], axis=0)[None, :]    # [1, 4H]

    x_seq = jax.random.normal(keys[12], (T, B, INPUT_NUM), jnp.float32)
    h0 = jax.random.normal(keys[13], (B, HIDDEN), jnp.float32)
    c0 = jax.random.normal(keys[14], (B, HIDDEN), jnp.float32)

    # bf16 Wh on the MXU -> loosened tolerances vs. the f32 reference.
    ATOL = 1e-2
    RTOL = 1e-2

    # 1) Single-step path: exactly the original module's forward.
    ht1, ct1 = lstm_cell_pallas(x_seq[0], h0, c0, Wx, Wh, b)
    jax.block_until_ready((ht1, ct1))
    ht1_ref, ct1_ref = lstm_cell_ref(x_seq[0], h0, c0, Wx, Wh, b)
    assert jnp.allclose(ht1, ht1_ref, atol=ATOL, rtol=RTOL)
    assert jnp.allclose(ct1, ct1_ref, atol=ATOL, rtol=RTOL)

    # 2) Fused full-sequence path: one pallas_call for the whole recurrence.
    ht_seq, ct_seq = lstm_sequence_pallas(x_seq, h0, c0, Wx, Wh, b, unroll=4)
    jax.block_until_ready((ht_seq, ct_seq))

    h_ref, c_ref = h0, c0
    for t in range(T):
        h_ref, c_ref = lstm_cell_ref(x_seq[t], h_ref, c_ref, Wx, Wh, b)
        assert jnp.allclose(ht_seq[t], h_ref, atol=ATOL, rtol=RTOL)
        assert jnp.allclose(ct_seq[t], c_ref, atol=ATOL, rtol=RTOL)

    print("KERNEL_OK")
</pallas_src>

<mosaic_0001>
module attributes {stable_mosaic.version = 11 : i64} {
  func.func @_input_proj_kernel(%arg0: i32, %arg1: memref<8x32xf32, #tpu.memory_space<vmem>>, %arg2: memref<32x512xf32, #tpu.memory_space<vmem>>, %arg3: memref<1x512xf32, #tpu.memory_space<vmem>>, %arg4: memref<8x512xf32, #tpu.memory_space<vmem>>) attributes {dimension_semantics = [#tpu.dimension_semantics<parallel>], iteration_bounds = array<i64: 1>, scalar_prefetch = 0 : i64, scratch_operands = 0 : i64, tpu.core_type = #tpu.core_type<tc>, window_params = [{transform_indices = @transform_0, window_bounds = array<i64: 8, 32>}, {pipeline_mode = #tpu.pipeline_mode<synchronous>, transform_indices = @transform_1, window_bounds = array<i64: 32, 512>}, {pipeline_mode = #tpu.pipeline_mode<synchronous>, transform_indices = @transform_2, window_bounds = array<i64: 1, 512>}, {transform_indices = @transform_3, window_bounds = array<i64: 8, 512>}]} {
    %c0 = arith.constant 0 : index
    %c0_0 = arith.constant 0 : index
    %0 = vector.load %arg1[%c0, %c0_0] : memref<8x32xf32, #tpu.memory_space<vmem>>, vector<8x32xf32>
    %c0_1 = arith.constant 0 : index
    %c0_2 = arith.constant 0 : index
    %1 = vector.load %arg2[%c0_1, %c0_2] : memref<32x512xf32, #tpu.memory_space<vmem>>, vector<32x512xf32>
    %cst = arith.constant dense<0.000000e+00> : vector<8x512xf32>
    %2 = tpu.matmul %0, %1, %cst {dimension_numbers = #tpu.dot_dimension_numbers<[1], [0], [0], [1], [0, 0, 1, 1], [], []>} : vector<8x32xf32>, vector<32x512xf32>, vector<8x512xf32> -> vector<8x512xf32>
    %c0_3 = arith.constant 0 : index
    %c0_4 = arith.constant 0 : index
    %3 = vector.load %arg3[%c0_3, %c0_4] : memref<1x512xf32, #tpu.memory_space<vmem>>, vector<1x512xf32>
    %4 = vector.broadcast %3 : vector<1x512xf32> to vector<8x512xf32>
    %5 = arith.addf %2, %4 : vector<8x512xf32>
    %c0_5 = arith.constant 0 : index
    %c0_6 = arith.constant 0 : index
    %6 = vector.load %arg4[%c0_5, %c0_6] : memref<8x512xf32, #tpu.memory_space<vmem>>, vector<8x512xf32>
    tpu.vector_store %arg4[%c0_5, %c0_6], %5 {strides = array<i32>} : memref<8x512xf32, #tpu.memory_space<vmem>>, vector<8x512xf32>,
    return
  }
  func.func @transform_0(%arg0: i32) -> (i32, i32) {
    %c0_i32 = arith.constant 0 : i32
    %c0_i32_0 = arith.constant 0 : i32
    return %arg0, %c0_i32 : i32, i32
  }
  func.func @transform_1(%arg0: i32) -> (i32, i32) {
    %c0_i32 = arith.constant 0 : i32
    %c0_i32_0 = arith.constant 0 : i32
    %c0_i32_1 = arith.constant 0 : i32
    return %c0_i32, %c0_i32_0 : i32, i32
  }
  func.func @transform_2(%arg0: i32) -> (i32, i32) {
    %c0_i32 = arith.constant 0 : i32
    %c0_i32_0 = arith.constant 0 : i32
    %c0_i32_1 = arith.constant 0 : i32
    return %c0_i32, %c0_i32_0 : i32, i32
  }
  func.func @transform_3(%arg0: i32) -> (i32, i32) {
    %c0_i32 = arith.constant 0 : i32
    %c0_i32_0 = arith.constant 0 : i32
    return %arg0, %c0_i32 : i32, i32
  }
}

</mosaic_0001>

<llo_original>
// kernel: tpu_custom_call.1
$region0: #{tpu_custom_call.1}
  #allocation0 [shape = 'u32[]', space=smem, size = 0x4, offset = 0x4, fixed_abs, tag = 'smem constant byte address 0x4 - core index']
  #allocation1 [shape = 'u32[144,128]{1,0:T(1,128)}', space=vmem, size = 0x12000, scoped, tag = 'internal scratch']
  %s0 = inlined_call_operand.hbm [shape: f32[8,32], index: 0, kind: input, shape index: {}]
  %s1 = inlined_call_operand.hbm [shape: f32[32,512], index: 1, kind: input, shape index: {}]
  %s2 = inlined_call_operand.hbm [shape: f32[1,512], index: 2, kind: input, shape index: {}]
  %s3 = inlined_call_operand.hbm [shape: f32[8,512], index: 3, kind: output, shape index: {}]
  %s4 = sld [smem:[#allocation0]]
  $region34: #{tpu_custom_call.1} parent=0
    _
  %s6 = ssub.s32 1, %s4
  %s7 = scalar_select 0, %s6, %s4
  $region1: #{tpu_custom_call.1} parent=0
    #allocation2 [shape = 'u8[4096]{0}', space=vmem, size = 0x1000, scoped, tag = 'input window, operand 0, single buffered']
    #allocation3 [shape = 's32[1]{0}', space=sflag, size = 0x4, scoped, tag = 'scoped memory for tpu_custom_call.1']
    #allocation4 [shape = 's32[1]{0}', space=sflag, size = 0x4, scoped, tag = 'scoped memory for tpu_custom_call.1']
    #allocation5 [shape = 'u8[65536]{0}', space=vmem, size = 0x10000, scoped, tag = 'input window, operand 1, single buffered']
    #allocation6 [shape = 's32[1]{0}', space=sflag, size = 0x4, scoped, tag = 'scoped memory for tpu_custom_call.1']
    #allocation7 [shape = 'u8[2048]{0}', space=vmem, size = 0x800, scoped, tag = 'input window, operand 2, single buffered']
    #allocation8 [shape = 'u8[16384]{0}', space=vmem, size = 0x4000, scoped, tag = 'output window, operand 0, single buffered']
    %8 = vsyncpa [#allocation3], 0
    %9 = vsyncpa [#allocation6], 0
    %10 = vsyncpa [#allocation4], 0
    // Predicated region
    $region2: #{tpu_custom_call.1} parent=1 // pred_check
      _
    $region3: #{tpu_custom_call.1} parent=1 // pred_check_branch
      %12 = sbr.rel (0) target = $region5
    $region4: #{tpu_custom_call.1} parent=1 // pred_region
      %s14 = ssub.s32 128, 128
      %15 = vsyncadd [#allocation3], %s14
      %s17 = sshll.u32 [#allocation2], 4
      %s18 = int_to_ptr.vmem [resolvable:$true] %s17
      %20 = dma.hbm_to_vmem [thread:$0]  %s0, 128, %s18, [#allocation3]
    $region5: #{tpu_custom_call.1} parent=1 // pred_fallthru
      _
    // Predicated region
    $region6: #{tpu_custom_call.1} parent=1 // pred_check
      _
    $region7: #{tpu_custom_call.1} parent=1 // pred_check_branch
      %22 = sbr.rel (0) target = $region9
    $region8: #{tpu_custom_call.1} parent=1 // pred_region
      %s24 = ssub.s32 2048, 2048
      %25 = vsyncadd [#allocation6], %s24
      %s26 = sshll.u32 [#allocation5], 4
      %s27 = int_to_ptr.vmem [resolvable:$true] %s26
      %32 = dma.hbm_to_vmem [thread:$0]  %s1, 2048, %s27, [#allocation6], 512, 512, 32
    $region9: #{tpu_custom_call.1} parent=1 // pred_fallthru
      _
    // Predicated region
    $region10: #{tpu_custom_call.1} parent=1 // pred_check
      _
    $region11: #{tpu_custom_call.1} parent=1 // pred_check_branch
      %34 = sbr.rel (0) target = $region13
    $region12: #{tpu_custom_call.1} parent=1 // pred_region
      %s36 = ssub.s32 64, 64
      %37 = vsyncadd [#allocation6], %s36
      %s39 = sshll.u32 [#allocation7], 4
      %s40 = int_to_ptr.vmem [resolvable:$true] %s39
      %42 = dma.hbm_to_vmem [thread:$0]  %s2, 64, %s40, [#allocation6]
    $region13: #{tpu_custom_call.1} parent=1 // pred_fallthru
      _
    // Predicated region
    $region14: #{tpu_custom_call.1} parent=1 // pred_check
      _
    $region15: #{tpu_custom_call.1} parent=1 // pred_check_branch
      %44 = sbr.rel (0) target = $region17
    $region16: #{tpu_custom_call.1} parent=1 // pred_region
      %45 = dma.done [#allocation3], 128
    $region17: #{tpu_custom_call.1} parent=1 // pred_fallthru
      _
    // Predicated region
    $region18: #{tpu_custom_call.1} parent=1 // pred_check
      _
    $region19: #{tpu_custom_call.1} parent=1 // pred_check_branch
      %47 = sbr.rel (0) target = $region21
    $region20: #{tpu_custom_call.1} parent=1 // pred_region
      %48 = dma.done [#allocation6], 2048
    $region21: #{tpu_custom_call.1} parent=1 // pred_fallthru
      _
    // Predicated region
    $region22: #{tpu_custom_call.1} parent=1 // pred_check
      _
    $region23: #{tpu_custom_call.1} parent=1 // pred_check_branch
      %50 = sbr.rel (0) target = $region25
    $region24: #{tpu_custom_call.1} parent=1 // pred_region
      %51 = dma.done [#allocation6], 64
    $region25: #{tpu_custom_call.1} parent=1 // pred_fallthru
      _
    %v52 = vld [vmem:[#allocation2] sm:$0xff]
    %v53 = vld [vmem:[#allocation5] sm:$0xff]
    %v54 = vld [vmem:[#allocation5 + $0x8] sm:$0xff]
    %v55 = vld [vmem:[#allocation5 + $0x10] sm:$0xff]
    %v56 = vld [vmem:[#allocation5 + $0x18] sm:$0xff]
    %v57 = vld [vmem:[#allocation5 + $0x20] sm:$0xff]
    %v58 = vld [vmem:[#allocation5 + $0x28] sm:$0xff]
    %v59 = vld [vmem:[#allocation5 + $0x30] sm:$0xff]
    %v60 = vld [vmem:[#allocation5 + $0x38] sm:$0xff]
    %v61 = vld [vmem:[#allocation5 + $0x40] sm:$0xff]
    %v62 = vld [vmem:[#allocation5 + $0x48] sm:$0xff]
    %v63 = vld [vmem:[#allocation5 + $0x50] sm:$0xff]
    %v64 = vld [vmem:[#allocation5 + $0x58] sm:$0xff]
    %v65 = vld [vmem:[#allocation5 + $0x60] sm:$0xff]
    %v66 = vld [vmem:[#allocation5 + $0x68] sm:$0xff]
    %v67 = vld [vmem:[#allocation5 + $0x70] sm:$0xff]
    %v68 = vld [vmem:[#allocation5 + $0x78] sm:$0xff]
    %v69 = vld [vmem:[#allocation7] sm:$0xf]
    %v71 = vlaneseq
    %v72 = vshrl.u32 %v71, 7
    %v73 = vsub.s32 0, %v72
    %v74 = vrot.slane %v69, %v73
    %v75 = vlaneseq
    %v76 = vshrl.u32 %v75, 7
    %v77 = vsub.s32 1, %v76
    %v78 = vrot.slane %v69, %v77
    %v79 = vlaneseq
    %v80 = vshrl.u32 %v79, 7
    %v81 = vsub.s32 2, %v80
    %v82 = vrot.slane %v69, %v81
    %v83 = vlaneseq
    %v84 = vshrl.u32 %v83, 7
    %v85 = vsub.s32 3, %v84
    %v86 = vrot.slane %v69, %v85
    %vm91 = vcmask 261120
    %v93 = vsel %vm91, %v52, 0
    %95 = vmatprep.subr.mxu0 %v54
    %96 = vmatpush1.msra.mxu0 %v53
    %97 = vmatprep.subr.mxu0 %v58
    %98 = vmatpush1.msra.mxu0 %v57
    %99 = vmatprep.subr.mxu0 %v62
    %100 = vmatpush1.msra.mxu0 %v61
    %101 = vmatprep.subr.mxu0 %v66
    %102 = vmatpush1.msra.mxu0 %v65
    %103 = vmatprep.subr.mxu0 0.0
    %104 = vmatpush1.msra.mxu0 0.0
    %105 = vmatprep.subr.mxu0 0.0
    %106 = vmatpush1.msra.mxu0 0.0
    %107 = vmatprep.subr.mxu0 0.0
    %108 = vmatpush1.msra.mxu0 0.0
    %109 = vmatprep.subr.mxu0 0.0
    %110 = vmatpush1.msra.mxu0 0.0
    %111 = vmatprep.subr.mxu0 0.0
    %112 = vmatpush1.msra.mxu0 0.0
    %113 = vmatprep.subr.mxu0 0.0
    %114 = vmatpush1.msra.mxu0 0.0
    %115 = vmatprep.subr.mxu0 0.0
    %116 = vmatpush1.msra.mxu0 0.0
    %117 = vmatprep.subr.mxu0 0.0
    %118 = vmatpush1.msra.mxu0 0.0
    %119 = vmatprep.subr.mxu0 0.0
    %120 = vmatpush1.msra.mxu0 0.0
    %121 = vmatprep.subr.mxu0 0.0
    %122 = vmatpush1.msra.mxu0 0.0
    %123 = vmatprep.subr.mxu0 0.0
    %124 = vmatpush1.msra.mxu0 0.0
    %125 = vmatprep.subr.mxu0 0.0
    %126 = vmatpush1.msra.mxu0 0.0
    %127 = vmatprep.subr.mxu0 0.0
    %128 = vmatpush1.msra.mxu0 0.0
    %129 = vmatprep.subr.mxu0 0.0
    %130 = vmatpush1.msra.mxu0 0.0
    %131 = vmatprep.subr.mxu0 0.0
    %132 = vmatpush1.msra.mxu0 0.0
    %133 = vmatprep.subr.mxu0 0.0
    %134 = vmatpush1.msra.mxu0 0.0
    %135 = vmatprep.subr.mxu0 0.0
    %136 = vmatpush1.msra.mxu0 0.0
    %137 = vmatprep.subr.mxu0 0.0
    %138 = vmatpush1.msra.mxu0 0.0
    %139 = vmatprep.subr.mxu0 0.0
    %140 = vmatpush1.msra.mxu0 0.0
    %141 = vmatprep.subr.mxu0 0.0
    %142 = vmatpush1.msra.mxu0 0.0
    %143 = vmatprep.subr.mxu0 0.0
    %144 = vmatpush1.msra.mxu0 0.0
    %145 = vmatprep.subr.mxu0 0.0
    %146 = vmatpush1.msra.mxu0 0.0
    %147 = vmatprep.subr.mxu0 0.0
    %148 = vmatpush1.msra.mxu0 0.0
    %149 = vmatprep.subr.mxu0 0.0
    %150 = vmatpush1.msra.mxu0 0.0
    %151 = vmatprep.subr.mxu0 0.0
    %152 = vmatpush1.msra.mxu0 0.0
    %153 = vmatprep.subr.mxu0 0.0
    %154 = vmatpush1.msra.mxu0 0.0
    %155 = vmatprep.subr.mxu0 0.0
    %156 = vmatpush1.msra.mxu0 0.0
    %157 = vmatprep.subr.mxu0 0.0
    %158 = vmatpush1.msra.mxu0 0.0
    %159 = vmatprep.mubr.f32.mxu0 0.0
    %160 = vmatmul.mubr.f32.gmra.mrb[0].mxu0 %v93
    %v161 = vpop.f32.mrb[0].mxu0
    %v162 = vadd.f32 %v74, %v161
    %v163 = vpop.f32.mrb[0].mxu0
    %v164 = vadd.f32 %v78, %v163
    %165 = vdwg.mxu0
    %166 = vmatprep.subr.mxu0 %v56
    %167 = vmatpush1.msra.mxu0 %v55
    %168 = vmatprep.subr.mxu0 %v60
    %169 = vmatpush1.msra.mxu0 %v59
    %170 = vmatprep.subr.mxu0 %v64
    %171 = vmatpush1.msra.mxu0 %v63
    %172 = vmatprep.subr.mxu0 %v68
    %173 = vmatpush1.msra.mxu0 %v67
    %174 = vmatprep.subr.mxu0 0.0
    %175 = vmatpush1.msra.mxu0 0.0
    %176 = vmatprep.subr.mxu0 0.0
    %177 = vmatpush1.msra.mxu0 0.0
    %178 = vmatprep.subr.mxu0 0.0
    %179 = vmatpush1.msra.mxu0 0.0
    %180 = vmatprep.subr.mxu0 0.0
    %181 = vmatpush1.msra.mxu0 0.0
    %182 = vmatprep.subr.mxu0 0.0
    %183 = vmatpush1.msra.mxu0 0.0
    %184 = vmatprep.subr.mxu0 0.0
    %185 = vmatpush1.msra.mxu0 0.0
    %186 = vmatprep.subr.mxu0 0.0
    %187 = vmatpush1.msra.mxu0 0.0
    %188 = vmatprep.subr.mxu0 0.0
    %189 = vmatpush1.msra.mxu0 0.0
    %190 = vmatprep.subr.mxu0 0.0
    %191 = vmatpush1.msra.mxu0 0.0
    %192 = vmatprep.subr.mxu0 0.0
    %193 = vmatpush1.msra.mxu0 0.0
    %194 = vmatprep.subr.mxu0 0.0
    %195 = vmatpush1.msra.mxu0 0.0
    %196 = vmatprep.subr.mxu0 0.0
    %197 = vmatpush1.msra.mxu0 0.0
    %198 = vmatprep.subr.mxu0 0.0
    %199 = vmatpush1.msra.mxu0 0.0
    %200 = vmatprep.subr.mxu0 0.0
    %201 = vmatpush1.msra.mxu0 0.0
    %202 = vmatprep.subr.mxu0 0.0
    %203 = vmatpush1.msra.mxu0 0.0
    %204 = vmatprep.subr.mxu0 0.0
    %205 = vmatpush1.msra.mxu0 0.0
    %206 = vmatprep.subr.mxu0 0.0
    %207 = vmatpush1.msra.mxu0 0.0
    %208 = vmatprep.subr.mxu0 0.0
    %209 = vmatpush1.msra.mxu0 0.0
    %210 = vmatprep.subr.mxu0 0.0
    %211 = vmatpush1.msra.mxu0 0.0
    %212 = vmatprep.subr.mxu0 0.0
    %213 = vmatpush1.msra.mxu0 0.0
    %214 = vmatprep.subr.mxu0 0.0
    %215 = vmatpush1.msra.mxu0 0.0
    %216 = vmatprep.subr.mxu0 0.0
    %217 = vmatpush1.msra.mxu0 0.0
    %218 = vmatprep.subr.mxu0 0.0
    %219 = vmatpush1.msra.mxu0 0.0
    %220 = vmatprep.subr.mxu0 0.0
    %221 = vmatpush1.msra.mxu0 0.0
    %222 = vmatprep.subr.mxu0 0.0
    %223 = vmatpush1.msra.mxu0 0.0
    %224 = vmatprep.subr.mxu0 0.0
    %225 = vmatpush1.msra.mxu0 0.0
    %226 = vmatprep.subr.mxu0 0.0
    %227 = vmatpush1.msra.mxu0 0.0
    %228 = vmatprep.subr.mxu0 0.0
    %229 = vmatpush1.msra.mxu0 0.0
    %230 = vmatprep.mubr.f32.mxu0 0.0
    %231 = vmatmul.mubr.f32.gmra.mrb[0].mxu0 %v93
    %v232 = vpop.f32.mrb[0].mxu0
    %v233 = vadd.f32 %v82, %v232
    %v234 = vpop.f32.mrb[0].mxu0
    %v235 = vadd.f32 %v86, %v234
    %236 = vdwg.mxu0
    %237 = vst [vmem:[#allocation8] sm:$0xff] %v162
    %238 = vst [vmem:[#allocation8 + $0x8] sm:$0xff] %v164
    %239 = vst [vmem:[#allocation8 + $0x10] sm:$0xff] %v233
    %240 = vst [vmem:[#allocation8 + $0x18] sm:$0xff] %v235
    // Predicated region
    $region26: #{tpu_custom_call.1} parent=1 // pred_check
      _
    $region27: #{tpu_custom_call.1} parent=1 // pred_check_branch
      %242 = sbr.rel (0) target = $region29
    $region28: #{tpu_custom_call.1} parent=1 // pred_region
      %s244 = ssub.s32 512, 512
      %245 = vsyncadd [#allocation4], %s244
      %s247 = sshll.u32 [#allocation8], 4
      %s248 = int_to_ptr.vmem [resolvable:$true] %s247
      %250 = dma.vmem_to_hbm [thread:$0]  %s248, 512, %s3, [#allocation4]
    $region29: #{tpu_custom_call.1} parent=1 // pred_fallthru
      _
    // Predicated region
    $region30: #{tpu_custom_call.1} parent=1 // pred_check
      _
    $region31: #{tpu_custom_call.1} parent=1 // pred_check_branch
      %252 = sbr.rel (0) target = $region33
    $region32: #{tpu_custom_call.1} parent=1 // pred_region
      %253 = dma.done [#allocation4], 512
    $region33: #{tpu_custom_call.1} parent=1 // pred_fallthru
      _
    %254 = vsyncpa [#allocation3], 1
    %255 = vsyncpa [#allocation6], 1
    %256 = vsyncpa [#allocation4], 1

</llo_original>
